<compile_context>
chip_gen: v5e
topology: v5e:2x2
jax: 0.10.0
libtpu: 0.0.40
codegen_flags: <defaults>
</compile_context>

<pallas_src>
import functools

import jax
import jax.numpy as jnp
from jax import lax
from jax.experimental import pallas as pl
from jax.experimental.pallas import tpu as pltpu

T = 0.2


def _proto_loss_kernel(predict_ref, label_ref, dproto_ref, out_ref,
                       pos_sum, neg_sum, pos_cnt, neg_cnt,
                       *, n_rows, tile_n):
    i = pl.program_id(0)

    @pl.when(i == 0)
    def _init():
        pos_sum[...] = jnp.zeros_like(pos_sum)
        neg_sum[...] = jnp.zeros_like(neg_sum)
        pos_cnt[...] = jnp.zeros_like(pos_cnt)
        neg_cnt[...] = jnp.zeros_like(neg_cnt)

    # Row-validity mask for the (possibly partial) trailing tile -- lets us run
    # with grid = ceil(N / TN) and no wrapper-side padding copy of `predict`.
    row = lax.broadcasted_iota(jnp.int32, (tile_n, 1), 0) + i * tile_n
    valid = row < n_rows                                          # (TN, 1) bool

    lab = label_ref[...].astype(jnp.float32)                      # (TN, 1)
    pos_mask = jnp.logical_and(valid, lab > 0.5)
    neg_mask = jnp.logical_and(valid, lab < 0.5)

    # Single MXU contraction against the scaled prototype difference:
    #   d_i = <p_i, (neg_proto - pos_proto)> / t = s_neg_i - s_pos_i
    d = jnp.dot(predict_ref[...], dproto_ref[...],
                preferred_element_type=jnp.float32)               # (TN, 1)

    # Stable softplus: per_pos = log(1 + exp(d)); per_neg = per_pos - d.
    sp = jnp.maximum(d, 0.0) + jnp.log(1.0 + jnp.exp(-jnp.abs(d)))
    per_pos = sp
    per_neg = sp - d

    zero = jnp.zeros_like(d)
    one = jnp.ones_like(d)
    # Selects (not multiplies) so NaN/Inf in invalid rows cannot propagate.
    pos_sum[...] += jnp.sum(jnp.where(pos_mask, per_pos, zero),
                            axis=(0, 1), keepdims=True)
    neg_sum[...] += jnp.sum(jnp.where(neg_mask, per_neg, zero),
                            axis=(0, 1), keepdims=True)
    pos_cnt[...] += jnp.sum(jnp.where(pos_mask, one, zero),
                            axis=(0, 1), keepdims=True)
    neg_cnt[...] += jnp.sum(jnp.where(neg_mask, one, zero),
                            axis=(0, 1), keepdims=True)

    @pl.when(i == pl.num_programs(0) - 1)
    def _finalize():
        pos_loss = jnp.where(pos_cnt[...] > 0.0,
                             pos_sum[...] / pos_cnt[...], 0.0)    # 0 if no positives
        neg_loss = neg_sum[...] / neg_cnt[...]                    # NaN if no negatives (matches torch)
        out_ref[...] = pos_loss + neg_loss


@functools.partial(jax.jit, static_argnames=("block_n",))
def proto_loss(predict, label, pos_proto, neg_proto, *, block_n=None):
    N, D = predict.shape
    itemsize = jnp.dtype(predict.dtype).itemsize

    # Prototype difference with 1/t folded in; kept at the MXU input dtype so
    # the contraction runs at native precision (all post-matmul math is f32).
    dproto = (neg_proto.astype(jnp.float32) - pos_proto.astype(jnp.float32)) / T
    dproto = dproto.reshape(D, 1).astype(predict.dtype)

    label2 = label.reshape(N, 1).astype(jnp.float32)

    # Tile over N: biggest tile whose double-buffered predict slab stays well
    # under the 32 MiB scoped-VMEM limit; multiple of 8 (sublane), <= ceil8(N).
    if block_n is None:
        budget = 8 * 1024 * 1024                      # bytes per predict buffer
        block_n = max(8, min(2048, budget // max(1, D * itemsize)))
    tn = max(8, (block_n // 8) * 8)
    tn = min(tn, max(8, ((N + 7) // 8) * 8))
    grid = (pl.cdiv(N, tn),)

    kernel = functools.partial(_proto_loss_kernel, n_rows=N, tile_n=tn)

    out = pl.pallas_call(
        kernel,
        out_shape=jax.ShapeDtypeStruct((1, 1), jnp.float32),
        grid_spec=pltpu.PrefetchScalarGridSpec(
            num_scalar_prefetch=0,
            grid=grid,
            in_specs=[
                pl.BlockSpec((tn, D), lambda i: (i, 0)),   # predict (streamed)
                pl.BlockSpec((tn, 1), lambda i: (i, 0)),   # labels
                pl.BlockSpec((D, 1), lambda i: (0, 0)),    # scaled proto diff (resident)
            ],
            out_specs=pl.BlockSpec((1, 1), lambda i: (0, 0)),
            scratch_shapes=[pltpu.VMEM((1, 1), jnp.float32)] * 4,
        ),
        compiler_params=pltpu.CompilerParams(
            dimension_semantics=("arbitrary",),        # reduction over N tiles
            vmem_limit_bytes=32 * 1024 * 1024,          # safe on v5e/v6e/v7x
        ),
        cost_estimate=pl.CostEstimate(
            flops=2 * N * D,
            transcendentals=2 * N,
            bytes_accessed=N * D * itemsize + N * 4 + D * itemsize + 4,
        ),
    )(predict, label2, dproto)
    return out[0, 0]


def proto_loss_ref(predict, label, pos_proto, neg_proto):
    """Pure-JAX reference mirroring the PyTorch forward (unstable exp form)."""
    s_pos = predict @ pos_proto / T
    s_neg = predict @ neg_proto / T
    e_pos, e_neg = jnp.exp(s_pos), jnp.exp(s_neg)
    denom = e_pos + e_neg
    per_pos = -jnp.log(e_pos / denom)
    per_neg = -jnp.log(e_neg / denom)
    pos_mask = (label > 0.5).astype(jnp.float32)
    neg_mask = (label < 0.5).astype(jnp.float32)
    pos_cnt = pos_mask.sum()
    neg_cnt = neg_mask.sum()
    pos_loss = jnp.where(pos_cnt > 0, (per_pos * pos_mask).sum() / pos_cnt, 0.0)
    neg_loss = (per_neg * neg_mask).sum() / neg_cnt
    return pos_loss + neg_loss


if __name__ == "__main__":
    key = jax.random.PRNGKey(0)
    k1, k2, k3 = jax.random.split(key, 3)

    N, D = 8, 32  # small shapes: N samples, D-dim embeddings
    predict = jax.random.normal(k1, (N, D), dtype=jnp.float32)
    # L2-normalize embeddings (typical for face-recognition features).
    predict = predict / jnp.linalg.norm(predict, axis=-1, keepdims=True)
    label = jnp.array([1, 0, 1, 1, 0, 0, 1, 0], dtype=jnp.float32)
    pos_proto = jax.random.normal(k2, (D,), dtype=jnp.float32)
    pos_proto = pos_proto / jnp.linalg.norm(pos_proto)
    neg_proto = jax.random.normal(k3, (D,), dtype=jnp.float32)
    neg_proto = neg_proto / jnp.linalg.norm(neg_proto)

    out = proto_loss(predict, label, pos_proto, neg_proto)
    out = jax.block_until_ready(out)

    ref = proto_loss_ref(predict, label, pos_proto, neg_proto)
    assert jnp.allclose(out, ref, rtol=1e-5, atol=1e-5), (out, ref)

    print("KERNEL_OK")
</pallas_src>

<mosaic_0001>
module attributes {stable_mosaic.version = 11 : i64} {
  func.func @_proto_loss_kernel(%arg0: i32, %arg1: memref<8x32xf32, #tpu.memory_space<vmem>>, %arg2: memref<8x1xf32, #tpu.memory_space<vmem>>, %arg3: memref<32x1xf32, #tpu.memory_space<vmem>>, %arg4: memref<1x1xf32, #tpu.memory_space<vmem>>, %arg5: memref<1x1xf32, #tpu.memory_space<vmem>>, %arg6: memref<1x1xf32, #tpu.memory_space<vmem>>, %arg7: memref<1x1xf32, #tpu.memory_space<vmem>>, %arg8: memref<1x1xf32, #tpu.memory_space<vmem>>) attributes {dimension_semantics = [#tpu.dimension_semantics<arbitrary>], iteration_bounds = array<i64: 1>, scalar_prefetch = 0 : i64, scratch_operands = 4 : i64, tpu.core_type = #tpu.core_type<tc>, window_params = [{transform_indices = @transform_0, window_bounds = array<i64: 8, 32>}, {transform_indices = @transform_1, window_bounds = array<i64: 8, 1>}, {pipeline_mode = #tpu.pipeline_mode<synchronous>, transform_indices = @transform_2, window_bounds = array<i64: 32, 1>}, {pipeline_mode = #tpu.pipeline_mode<synchronous>, transform_indices = @transform_3, window_bounds = array<i64: 1, 1>}]} {
    %c0_i32 = arith.constant 0 : i32
    %0 = arith.cmpi eq, %arg0, %c0_i32 : i32
    %1 = arith.extui %0 : i1 to i32
    %c0_i32_0 = arith.constant 0 : i32
    %2 = arith.cmpi ne, %1, %c0_i32_0 : i32
    scf.if %2 {
      %cst_36 = arith.constant 0.000000e+00 : f32
      %71 = vector.broadcast %cst_36 : f32 to vector<1x1xf32>
      %c0_37 = arith.constant 0 : index
      %c0_38 = arith.constant 0 : index
      %72 = vector.load %arg5[%c0_37, %c0_38] : memref<1x1xf32, #tpu.memory_space<vmem>>, vector<1x1xf32>
      tpu.vector_store %arg5[%c0_37, %c0_38], %71 {strides = array<i32>} : memref<1x1xf32, #tpu.memory_space<vmem>>, vector<1x1xf32>,
      %cst_39 = arith.constant 0.000000e+00 : f32
      %73 = vector.broadcast %cst_39 : f32 to vector<1x1xf32>
      %c0_40 = arith.constant 0 : index
      %c0_41 = arith.constant 0 : index
      %74 = vector.load %arg6[%c0_40, %c0_41] : memref<1x1xf32, #tpu.memory_space<vmem>>, vector<1x1xf32>
      tpu.vector_store %arg6[%c0_40, %c0_41], %73 {strides = array<i32>} : memref<1x1xf32, #tpu.memory_space<vmem>>, vector<1x1xf32>,
      %cst_42 = arith.constant 0.000000e+00 : f32
      %75 = vector.broadcast %cst_42 : f32 to vector<1x1xf32>
      %c0_43 = arith.constant 0 : index
      %c0_44 = arith.constant 0 : index
      %76 = vector.load %arg7[%c0_43, %c0_44] : memref<1x1xf32, #tpu.memory_space<vmem>>, vector<1x1xf32>
      tpu.vector_store %arg7[%c0_43, %c0_44], %75 {strides = array<i32>} : memref<1x1xf32, #tpu.memory_space<vmem>>, vector<1x1xf32>,
      %cst_45 = arith.constant 0.000000e+00 : f32
      %77 = vector.broadcast %cst_45 : f32 to vector<1x1xf32>
      %c0_46 = arith.constant 0 : index
      %c0_47 = arith.constant 0 : index
      %78 = vector.load %arg8[%c0_46, %c0_47] : memref<1x1xf32, #tpu.memory_space<vmem>>, vector<1x1xf32>
      tpu.vector_store %arg8[%c0_46, %c0_47], %77 {strides = array<i32>} : memref<1x1xf32, #tpu.memory_space<vmem>>, vector<1x1xf32>,
    } else {
    }
    %3 = tpu.iota {dimensions = array<i32: 0>} : vector<8x1xi32>
    %c8_i32 = arith.constant 8 : i32
    %4 = arith.muli %arg0, %c8_i32 : i32
    %5 = vector.broadcast %4 : i32 to vector<8x1xi32>
    %6 = arith.addi %3, %5 : vector<8x1xi32>
    %c8_i32_1 = arith.constant 8 : i32
    %7 = vector.broadcast %c8_i32_1 : i32 to vector<8x1xi32>
    %8 = arith.cmpi slt, %6, %7 : vector<8x1xi32>
    %c0 = arith.constant 0 : index
    %c0_2 = arith.constant 0 : index
    %9 = vector.load %arg2[%c0, %c0_2] : memref<8x1xf32, #tpu.memory_space<vmem>>, vector<8x1xf32>
    %cst = arith.constant 5.000000e-01 : f32
    %10 = vector.broadcast %cst : f32 to vector<8x1xf32>
    %11 = arith.cmpf ogt, %9, %10 : vector<8x1xf32>
    %12 = arith.andi %8, %11 : vector<8x1xi1>
    %cst_3 = arith.constant 5.000000e-01 : f32
    %13 = vector.broadcast %cst_3 : f32 to vector<8x1xf32>
    %14 = arith.cmpf olt, %9, %13 : vector<8x1xf32>
    %15 = arith.andi %8, %14 : vector<8x1xi1>
    %c0_4 = arith.constant 0 : index
    %c0_5 = arith.constant 0 : index
    %16 = vector.load %arg1[%c0_4, %c0_5] : memref<8x32xf32, #tpu.memory_space<vmem>>, vector<8x32xf32>
    %c0_6 = arith.constant 0 : index
    %c0_7 = arith.constant 0 : index
    %17 = vector.load %arg3[%c0_6, %c0_7] : memref<32x1xf32, #tpu.memory_space<vmem>>, vector<32x1xf32>
    %cst_8 = arith.constant dense<0.000000e+00> : vector<8x1xf32>
    %18 = tpu.matmul %16, %17, %cst_8 {dimension_numbers = #tpu.dot_dimension_numbers<[1], [0], [0], [1], [0, 0, 1, 1], [], []>} : vector<8x32xf32>, vector<32x1xf32>, vector<8x1xf32> -> vector<8x1xf32>
    %cst_9 = arith.constant 0.000000e+00 : f32
    %19 = vector.broadcast %cst_9 : f32 to vector<8x1xf32>
    %20 = arith.maximumf %18, %19 : vector<8x1xf32>
    %21 = math.absf %18 : vector<8x1xf32>
    %cst_10 = arith.constant 0.000000e+00 : f32
    %22 = vector.broadcast %cst_10 : f32 to vector<8x1xf32>
    %23 = arith.subf %22, %21 : vector<8x1xf32>
    %24 = math.exp %23 : vector<8x1xf32>
    %cst_11 = arith.constant 1.000000e+00 : f32
    %25 = vector.broadcast %cst_11 : f32 to vector<8x1xf32>
    %26 = arith.addf %25, %24 : vector<8x1xf32>
    %27 = math.log %26 : vector<8x1xf32>
    %28 = arith.addf %20, %27 : vector<8x1xf32>
    %29 = arith.subf %28, %18 : vector<8x1xf32>
    %cst_12 = arith.constant 0.000000e+00 : f32
    %30 = vector.broadcast %cst_12 : f32 to vector<8x1xf32>
    %cst_13 = arith.constant 1.000000e+00 : f32
    %31 = vector.broadcast %cst_13 : f32 to vector<8x1xf32>
    %c0_14 = arith.constant 0 : index
    %c0_15 = arith.constant 0 : index
    %32 = vector.load %arg5[%c0_14, %c0_15] : memref<1x1xf32, #tpu.memory_space<vmem>>, vector<1x1xf32>
    %33 = arith.select %12, %28, %30 : vector<8x1xi1>, vector<8x1xf32>
    %34 = vector.shape_cast %33 : vector<8x1xf32> to vector<1x8x1xf32>
    %cst_16 = arith.constant dense<0.000000e+00> : vector<1xf32>
    %35 = vector.multi_reduction <add>, %34, %cst_16 [1, 2] : vector<1x8x1xf32> to vector<1xf32>
    %36 = vector.shape_cast %35 : vector<1xf32> to vector<1x1x1xf32>
    %37 = vector.extract %36[0, 0, 0] : f32 from vector<1x1x1xf32>
    %38 = vector.broadcast %37 : f32 to vector<1x1xf32>
    %39 = arith.addf %32, %38 : vector<1x1xf32>
    %c0_17 = arith.constant 0 : index
    %c0_18 = arith.constant 0 : index
    %40 = vector.load %arg5[%c0_17, %c0_18] : memref<1x1xf32, #tpu.memory_space<vmem>>, vector<1x1xf32>
    tpu.vector_store %arg5[%c0_17, %c0_18], %39 {strides = array<i32>} : memref<1x1xf32, #tpu.memory_space<vmem>>, vector<1x1xf32>,
    %c0_19 = arith.constant 0 : index
    %c0_20 = arith.constant 0 : index
    %41 = vector.load %arg6[%c0_19, %c0_20] : memref<1x1xf32, #tpu.memory_space<vmem>>, vector<1x1xf32>
    %42 = arith.select %15, %29, %30 : vector<8x1xi1>, vector<8x1xf32>
    %43 = vector.shape_cast %42 : vector<8x1xf32> to vector<1x8x1xf32>
    %cst_21 = arith.constant dense<0.000000e+00> : vector<1xf32>
    %44 = vector.multi_reduction <add>, %43, %cst_21 [1, 2] : vector<1x8x1xf32> to vector<1xf32>
    %45 = vector.shape_cast %44 : vector<1xf32> to vector<1x1x1xf32>
    %46 = vector.extract %45[0, 0, 0] : f32 from vector<1x1x1xf32>
    %47 = vector.broadcast %46 : f32 to vector<1x1xf32>
    %48 = arith.addf %41, %47 : vector<1x1xf32>
    %c0_22 = arith.constant 0 : index
    %c0_23 = arith.constant 0 : index
    %49 = vector.load %arg6[%c0_22, %c0_23] : memref<1x1xf32, #tpu.memory_space<vmem>>, vector<1x1xf32>
    tpu.vector_store %arg6[%c0_22, %c0_23], %48 {strides = array<i32>} : memref<1x1xf32, #tpu.memory_space<vmem>>, vector<1x1xf32>,
    %c0_24 = arith.constant 0 : index
    %c0_25 = arith.constant 0 : index
    %50 = vector.load %arg7[%c0_24, %c0_25] : memref<1x1xf32, #tpu.memory_space<vmem>>, vector<1x1xf32>
    %51 = arith.select %12, %31, %30 : vector<8x1xi1>, vector<8x1xf32>
    %52 = vector.shape_cast %51 : vector<8x1xf32> to vector<1x8x1xf32>
    %cst_26 = arith.constant dense<0.000000e+00> : vector<1xf32>
    %53 = vector.multi_reduction <add>, %52, %cst_26 [1, 2] : vector<1x8x1xf32> to vector<1xf32>
    %54 = vector.shape_cast %53 : vector<1xf32> to vector<1x1x1xf32>
    %55 = vector.extract %54[0, 0, 0] : f32 from vector<1x1x1xf32>
    %56 = vector.broadcast %55 : f32 to vector<1x1xf32>
    %57 = arith.addf %50, %56 : vector<1x1xf32>
    %c0_27 = arith.constant 0 : index
    %c0_28 = arith.constant 0 : index
    %58 = vector.load %arg7[%c0_27, %c0_28] : memref<1x1xf32, #tpu.memory_space<vmem>>, vector<1x1xf32>
    tpu.vector_store %arg7[%c0_27, %c0_28], %57 {strides = array<i32>} : memref<1x1xf32, #tpu.memory_space<vmem>>, vector<1x1xf32>,
    %c0_29 = arith.constant 0 : index
    %c0_30 = arith.constant 0 : index
    %59 = vector.load %arg8[%c0_29, %c0_30] : memref<1x1xf32, #tpu.memory_space<vmem>>, vector<1x1xf32>
    %60 = arith.select %15, %31, %30 : vector<8x1xi1>, vector<8x1xf32>
    %61 = vector.shape_cast %60 : vector<8x1xf32> to vector<1x8x1xf32>
    %cst_31 = arith.constant dense<0.000000e+00> : vector<1xf32>
    %62 = vector.multi_reduction <add>, %61, %cst_31 [1, 2] : vector<1x8x1xf32> to vector<1xf32>
    %63 = vector.shape_cast %62 : vector<1xf32> to vector<1x1x1xf32>
    %64 = vector.extract %63[0, 0, 0] : f32 from vector<1x1x1xf32>
    %65 = vector.broadcast %64 : f32 to vector<1x1xf32>
    %66 = arith.addf %59, %65 : vector<1x1xf32>
    %c0_32 = arith.constant 0 : index
    %c0_33 = arith.constant 0 : index
    %67 = vector.load %arg8[%c0_32, %c0_33] : memref<1x1xf32, #tpu.memory_space<vmem>>, vector<1x1xf32>
    tpu.vector_store %arg8[%c0_32, %c0_33], %66 {strides = array<i32>} : memref<1x1xf32, #tpu.memory_space<vmem>>, vector<1x1xf32>,
    %c0_i32_34 = arith.constant 0 : i32
    %68 = arith.cmpi eq, %arg0, %c0_i32_34 : i32
    %69 = arith.extui %68 : i1 to i32
    %c0_i32_35 = arith.constant 0 : i32
    %70 = arith.cmpi ne, %69, %c0_i32_35 : i32
    scf.if %70 {
      %c0_36 = arith.constant 0 : index
      %c0_37 = arith.constant 0 : index
      %71 = vector.load %arg7[%c0_36, %c0_37] : memref<1x1xf32, #tpu.memory_space<vmem>>, vector<1x1xf32>
      %cst_38 = arith.constant 0.000000e+00 : f32
      %72 = vector.broadcast %cst_38 : f32 to vector<1x1xf32>
      %73 = arith.cmpf ogt, %71, %72 : vector<1x1xf32>
      %c0_39 = arith.constant 0 : index
      %c0_40 = arith.constant 0 : index
      %74 = vector.load %arg5[%c0_39, %c0_40] : memref<1x1xf32, #tpu.memory_space<vmem>>, vector<1x1xf32>
      %c0_41 = arith.constant 0 : index
      %c0_42 = arith.constant 0 : index
      %75 = vector.load %arg7[%c0_41, %c0_42] : memref<1x1xf32, #tpu.memory_space<vmem>>, vector<1x1xf32>
      %76 = arith.divf %74, %75 : vector<1x1xf32>
      %cst_43 = arith.constant 0.000000e+00 : f32
      %77 = vector.broadcast %cst_43 : f32 to vector<1x1xf32>
      %78 = arith.select %73, %76, %77 : vector<1x1xi1>, vector<1x1xf32>
      %c0_44 = arith.constant 0 : index
      %c0_45 = arith.constant 0 : index
      %79 = vector.load %arg6[%c0_44, %c0_45] : memref<1x1xf32, #tpu.memory_space<vmem>>, vector<1x1xf32>
      %c0_46 = arith.constant 0 : index
      %c0_47 = arith.constant 0 : index
      %80 = vector.load %arg8[%c0_46, %c0_47] : memref<1x1xf32, #tpu.memory_space<vmem>>, vector<1x1xf32>
      %81 = arith.divf %79, %80 : vector<1x1xf32>
      %82 = arith.addf %78, %81 : vector<1x1xf32>
      %c0_48 = arith.constant 0 : index
      %c0_49 = arith.constant 0 : index
      %83 = vector.load %arg4[%c0_48, %c0_49] : memref<1x1xf32, #tpu.memory_space<vmem>>, vector<1x1xf32>
      tpu.vector_store %arg4[%c0_48, %c0_49], %82 {strides = array<i32>} : memref<1x1xf32, #tpu.memory_space<vmem>>, vector<1x1xf32>,
    } else {
    }
    return
  }
  func.func @transform_0(%arg0: i32) -> (i32, i32) {
    %c0_i32 = arith.constant 0 : i32
    %c0_i32_0 = arith.constant 0 : i32
    return %arg0, %c0_i32 : i32, i32
  }
  func.func @transform_1(%arg0: i32) -> (i32, i32) {
    %c0_i32 = arith.constant 0 : i32
    %c0_i32_0 = arith.constant 0 : i32
    return %arg0, %c0_i32 : i32, i32
  }
  func.func @transform_2(%arg0: i32) -> (i32, i32) {
    %c0_i32 = arith.constant 0 : i32
    %c0_i32_0 = arith.constant 0 : i32
    %c0_i32_1 = arith.constant 0 : i32
    return %c0_i32, %c0_i32_0 : i32, i32
  }
  func.func @transform_3(%arg0: i32) -> (i32, i32) {
    %c0_i32 = arith.constant 0 : i32
    %c0_i32_0 = arith.constant 0 : i32
    %c0_i32_1 = arith.constant 0 : i32
    return %c0_i32, %c0_i32_0 : i32, i32
  }
}

</mosaic_0001>

<llo_original>
// kernel: proto_loss.1
$region0: #{proto_loss.1}
  #allocation0 [shape = 'u32[]', space=smem, size = 0x4, offset = 0x4, fixed_abs, tag = 'smem constant byte address 0x4 - core index']
  #allocation1 [shape = 'u32[72,128]{1,0:T(1,128)}', space=vmem, size = 0x9000, scoped, tag = 'internal scratch']
  #allocation2 [shape = 'f32[1,1]{1,0:T(1,128)}', space=vmem, size = 0x200, scoped, tag = 'scratch operand']
  #allocation3 [shape = 'f32[1,1]{1,0:T(1,128)}', space=vmem, size = 0x200, scoped, tag = 'scratch operand']
  #allocation4 [shape = 'f32[1,1]{1,0:T(1,128)}', space=vmem, size = 0x200, scoped, tag = 'scratch operand']
  #allocation5 [shape = 'f32[1,1]{1,0:T(1,128)}', space=vmem, size = 0x200, scoped, tag = 'scratch operand']
  %s0 = inlined_call_operand.vmem [shape: f32[8,32], index: 0, kind: input, shape index: {}]
  %s1 = inlined_call_operand.vmem [shape: f32[8,1], index: 1, kind: input, shape index: {}]
  %s2 = inlined_call_operand.vmem [shape: f32[32,1], index: 2, kind: input, shape index: {}]
  %s3 = inlined_call_operand.hbm [shape: f32[1,1], index: 3, kind: output, shape index: {}]
  %s4 = sld [smem:[#allocation0]]
  $region30: #{proto_loss.1} parent=0
    _
  %s6 = ssub.s32 1, %s4
  %s7 = scalar_select 0, %s6, %s4
  $region1: #{proto_loss.1} parent=0
    #allocation6 [shape = 'u8[512]{0}', space=vmem, size = 0x400, scoped, tag = 'output window, operand 0, single buffered']
    #allocation7 [shape = 's32[1]{0}', space=sflag, size = 0x4, scoped, tag = 'scoped memory for proto_loss.1']
    %8 = vsyncpa [#allocation7], 0
    // Predicated region
    $region2: #{proto_loss.1} parent=1 // pred_check
      _
    $region3: #{proto_loss.1} parent=1 // pred_check_branch
      %10 = sbr.rel (0) target = $region5
    $region4: #{proto_loss.1} parent=1 // pred_region
      _
    $region5: #{proto_loss.1} parent=1 // pred_fallthru
      _
    // Predicated region
    $region6: #{proto_loss.1} parent=1 // pred_check
      _
    $region7: #{proto_loss.1} parent=1 // pred_check_branch
      %12 = sbr.rel (0) target = $region9
    $region8: #{proto_loss.1} parent=1 // pred_region
      _
    $region9: #{proto_loss.1} parent=1 // pred_fallthru
      _
    // Predicated region
    $region10: #{proto_loss.1} parent=1 // pred_check
      _
    $region11: #{proto_loss.1} parent=1 // pred_check_branch
      %14 = sbr.rel (0) target = $region13
    $region12: #{proto_loss.1} parent=1 // pred_region
      _
    $region13: #{proto_loss.1} parent=1 // pred_fallthru
      _
    %p15 = scmp.eq.s32.totalorder 0, 0
    // Predicated region
    $region14: #{proto_loss.1} parent=1 // pred_check
      %p16 = pneg %p15
    $region15: #{proto_loss.1} parent=1 // pred_check_branch
      %18 = sbr.rel (%p16) target = $region17
    $region16: #{proto_loss.1} parent=1 // pred_region
      %vm19 = vcmask 0
      %20 = vst.msk [vmem:[#allocation2] sm:$0x1] %vm19, 0.0
      %21 = vst.msk [vmem:[#allocation3] sm:$0x1] %vm19, 0.0
      %22 = vst.msk [vmem:[#allocation4] sm:$0x1] %vm19, 0.0
      %23 = vst.msk [vmem:[#allocation5] sm:$0x1] %vm19, 0.0
    $region17: #{proto_loss.1} parent=1 // pred_fallthru
      _
    %v24 = vlaneseq
    %v25 = vshrl.u32 %v24, 7
    %s26 = smul.u32 0, 8
    %v27 = vstv %s26
    %v28 = vadd.s32 %v25, %v27
    %vm29 = vcmp.lt.s32.totalorder %v28, 8
    %v30 = vld [vmem:[%s1] sm:$0xff]
    %vm31 = vcmp.gt.f32.partialorder %v30, 0.5
    %vm32 = vmand %vm29, %vm31
    %vm33 = vcmp.lt.f32.partialorder %v30, 0.5
    %vm34 = vmand %vm29, %vm33
    %v35 = vld [vmem:[%s0] sm:$0xff]
    %v36 = vld [vmem:[%s2] sm:$0xff]
    %v37 = vld [vmem:[%s2 + $0x8] sm:$0xff]
    %v38 = vld [vmem:[%s2 + $0x10] sm:$0xff]
    %v39 = vld [vmem:[%s2 + $0x18] sm:$0xff]
    %vm40 = vcmask 261120
    %v42 = vsel %vm40, %v35, 0
    %44 = vmatpush.msra.mxu0 0.0
    %45 = vmatpush.msra.mxu0 0.0
    %46 = vmatpush.msra.mxu0 0.0
    %47 = vmatpush.msra.mxu0 0.0
    %48 = vmatpush.msra.mxu0 0.0
    %49 = vmatpush.msra.mxu0 0.0
    %50 = vmatpush.msra.mxu0 0.0
    %51 = vmatpush.msra.mxu0 0.0
    %52 = vmatpush.msra.mxu0 0.0
    %53 = vmatpush.msra.mxu0 0.0
    %54 = vmatpush.msra.mxu0 0.0
    %55 = vmatpush.msra.mxu0 0.0
    %56 = vmatpush.msra.mxu0 %v39
    %57 = vmatpush.msra.mxu0 %v38
    %58 = vmatpush.msra.mxu0 %v37
    %59 = vmatpush.msra.mxu0 %v36
    %60 = vmatmul.f32.gmra.mxu0 %v42
    %v61 = vpop.f32.mrf.mxu0
    %v62 = vadd.f32 0.0, %v61
    %63 = vdwg.mxu0
    %v64 = vmax.f32 %v62, 0.0
    %v65 = vand.u32 2147483647, %v62
    %v66 = vsub.f32 0.0, %v65
    %v67 = vmul.f32 %v66, 1.442695
    %v68 = vpow.pop %v67
    %v69 = vadd.f32 %v68, 1.0
    %v70 = vlog2.pop %v69
    %v71 = vmul.f32 %v70, 0.6931472
    %v72 = vadd.f32 %v64, %v71
    %v73 = vsub.f32 %v72, %v62
    %v74 = vld [vmem:[#allocation2] sm:$0x1]
    %v75 = vsel %vm32, %v72, 0.0
    %vm76 = vcmask 7168
    %v77 = vsel %vm76, %v75, 0.0
    %78 = vadd.xlane.f32.xlu0 %v77
    %v79 = vpop.xlane.xlu0 %78
    %v80 = vrot.slane %v79, 4
    %v81 = vadd.f32 %v79, %v80
    %v82 = vrot.slane %v81, 2
    %v83 = vadd.f32 %v81, %v82
    %v84 = vrot.slane %v83, 1
    %v85 = vadd.f32 %v83, %v84
    %s86 = vtos %v85
    %v87 = vstv %s86
    %v88 = vadd.f32 %v74, %v87
    %vm89 = vcmask 0
    %90 = vst.msk [vmem:[#allocation2] sm:$0x1] %vm89, %v88
    %v91 = vld [vmem:[#allocation3] sm:$0x1]
    %v92 = vsel %vm34, %v73, 0.0
    %v93 = vsel %vm76, %v92, 0.0
    %94 = vadd.xlane.f32.xlu0 %v93
    %v95 = vpop.xlane.xlu0 %94
    %v96 = vrot.slane %v95, 4
    %v97 = vadd.f32 %v95, %v96
    %v98 = vrot.slane %v97, 2
    %v99 = vadd.f32 %v97, %v98
    %v100 = vrot.slane %v99, 1
    %v101 = vadd.f32 %v99, %v100
    %s102 = vtos %v101
    %v103 = vstv %s102
    %v104 = vadd.f32 %v91, %v103
    %105 = vst.msk [vmem:[#allocation3] sm:$0x1] %vm89, %v104
    %v106 = vld [vmem:[#allocation4] sm:$0x1]
    %v107 = vsel %vm32, 1.0, 0.0
    %v108 = vsel %vm76, %v107, 0.0
    %109 = vadd.xlane.f32.xlu0 %v108
    %v110 = vpop.xlane.xlu0 %109
    %v111 = vrot.slane %v110, 4
    %v112 = vadd.f32 %v110, %v111
    %v113 = vrot.slane %v112, 2
    %v114 = vadd.f32 %v112, %v113
    %v115 = vrot.slane %v114, 1
    %v116 = vadd.f32 %v114, %v115
    %s117 = vtos %v116
    %v118 = vstv %s117
    %v119 = vadd.f32 %v106, %v118
    %120 = vst.msk [vmem:[#allocation4] sm:$0x1] %vm89, %v119
    %v121 = vld [vmem:[#allocation5] sm:$0x1]
    %v122 = vsel %vm34, 1.0, 0.0
    %v123 = vsel %vm76, %v122, 0.0
    %124 = vadd.xlane.f32.xlu0 %v123
    %v125 = vpop.xlane.xlu0 %124
    %v126 = vrot.slane %v125, 4
    %v127 = vadd.f32 %v125, %v126
    %v128 = vrot.slane %v127, 2
    %v129 = vadd.f32 %v127, %v128
    %v130 = vrot.slane %v129, 1
    %v131 = vadd.f32 %v129, %v130
    %s132 = vtos %v131
    %v133 = vstv %s132
    %v134 = vadd.f32 %v121, %v133
    %135 = vst.msk [vmem:[#allocation5] sm:$0x1] %vm89, %v134
    // Predicated region
    $region18: #{proto_loss.1} parent=1 // pred_check
      %p136 = pneg %p15
    $region19: #{proto_loss.1} parent=1 // pred_check_branch
      %138 = sbr.rel (%p136) target = $region21
    $region20: #{proto_loss.1} parent=1 // pred_region
      %v139 = vld [vmem:[#allocation4] sm:$0x1]
      %vm140 = vcmp.gt.f32.partialorder %v139, 0.0
      %v141 = vld [vmem:[#allocation2] sm:$0x1]
      %v142 = vrcp.pop %v139
      %v143 = vmul.f32 %v139, %v142
      %v144 = vsub.f32 1.0, %v143
      %v145 = vmul.f32 %v142, %v144
      %v146 = vadd.f32 %v142, %v145
      %vm147 = vweird.f32 %v139
      %vm148 = vweird.f32 %v142
      %vm149 = vmor %vm147, %vm148
      %v150 = vsel %vm149, %v142, %v146
      %v151 = vand.u32 2147483647, %v139
      %vm152 = vcmp.eq.f32.partialorder %v151, 8.507059e+37
      %v153 = vand.u32 %v139, 2147483648
      %v154 = vor.u32 1.1754944e-38, %v153
      %v155 = vsel %vm152, %v154, %v150
      %v156 = vmul.f32 %v141, %v155
      %v157 = vsel %vm140, %v156, 0.0
      %v158 = vld [vmem:[#allocation3] sm:$0x1]
      %v159 = vld [vmem:[#allocation5] sm:$0x1]
      %v160 = vrcp.pop %v159
      %v161 = vmul.f32 %v159, %v160
      %v162 = vsub.f32 1.0, %v161
      %v163 = vmul.f32 %v160, %v162
      %v164 = vadd.f32 %v160, %v163
      %vm165 = vweird.f32 %v159
      %vm166 = vweird.f32 %v160
      %vm167 = vmor %vm165, %vm166
      %v168 = vsel %vm167, %v160, %v164
      %v169 = vand.u32 2147483647, %v159
      %vm170 = vcmp.eq.f32.partialorder %v169, 8.507059e+37
      %v171 = vand.u32 %v159, 2147483648
      %v172 = vor.u32 1.1754944e-38, %v171
      %v173 = vsel %vm170, %v172, %v168
      %v174 = vmul.f32 %v158, %v173
      %v175 = vadd.f32 %v157, %v174
      %176 = vst.msk [vmem:[#allocation6] sm:$0x1] %vm89, %v175
    $region21: #{proto_loss.1} parent=1 // pred_fallthru
      _
    // Predicated region
    $region22: #{proto_loss.1} parent=1 // pred_check
      _
    $region23: #{proto_loss.1} parent=1 // pred_check_branch
      %178 = sbr.rel (0) target = $region25
    $region24: #{proto_loss.1} parent=1 // pred_region
      %180 = vsyncadd [#allocation7], 0
      %s182 = sshll.u32 [#allocation6], 4
      %s183 = int_to_ptr.vmem [resolvable:$true] %s182
      %s184 = sshll.u32 %s3, 4
      %s185 = int_to_ptr.hbm [resolvable:$true] %s184
      %187 = dma.vmem_to_hbm [thread:$0]  %s183, 16, %s185, [#allocation7]
    $region25: #{proto_loss.1} parent=1 // pred_fallthru
      _
    // Predicated region
    $region26: #{proto_loss.1} parent=1 // pred_check
      _
    $region27: #{proto_loss.1} parent=1 // pred_check_branch
      %189 = sbr.rel (0) target = $region29
    $region28: #{proto_loss.1} parent=1 // pred_region
      %191 = dma.done [#allocation7], 16
    $region29: #{proto_loss.1} parent=1 // pred_fallthru
      _
    %192 = vsyncpa [#allocation7], 1

</llo_original>
